<compile_context>
chip_gen: v7x
topology: tpu7x:2x2x1
jax: 0.10.0
libtpu: 0.0.40
codegen_flags: <defaults>
</compile_context>

<pallas_src>
import functools

import jax
import jax.numpy as jnp
from jax import lax
from jax.experimental import pallas as pl
from jax.experimental.pallas import tpu as pltpu

HIDDEN_SIZE = 64
INPUT_SIZE = 1
OUTPUT_SIZE = 1


def _lstm_kernel(x_ref, wih_ref, whh_ref, b_ref, wlin_ref, blin_ref,
                 out_ref, gx_ref, hall_ref, *, seq, batch, hidden):
    """Whole-sequence LSTM + Linear in one kernel invocation.

    x_ref    : (seq*B, I)   flattened inputs (time-major rows)
    wih_ref  : (I, 4H)      input-to-hidden weights (pre-transposed, i/f/o cols pre-scaled by 0.5)
    whh_ref  : (H, 4H)      hidden-to-hidden weights (pre-transposed, i/f/o cols pre-scaled by 0.5)
    b_ref    : (1, 4H)      combined bias b_ih + b_hh (i/f/o cols pre-scaled by 0.5)
    wlin_ref : (H, O)       output Linear weights (pre-transposed)
    blin_ref : (1, O)       output Linear bias
    out_ref  : (seq*B, O)   flattened outputs
    gx_ref   : (seq*B, 4H)  VMEM scratch: precomputed input projection
    hall_ref : (seq*B, H)   VMEM scratch: h_t for every timestep
    """
    B, H = batch, hidden

    # ---- Prologue: input projection for ALL timesteps at once. ----
    # With I == 1 this is a pure VPU broadcast multiply (no MXU push).
    if x_ref.shape[1] == 1:
        gx_ref[...] = x_ref[...] * wih_ref[...] + b_ref[...]
    else:
        gx_ref[...] = (jnp.dot(x_ref[...], wih_ref[...],
                               preferred_element_type=jnp.float32)
                       + b_ref[...])

    # Hoist the recurrent weight load out of the loop: one set of vlds, the
    # weights then stay resident across every unrolled step instead of being
    # re-read (and re-staged) each timestep.
    whh = whh_ref[...]

    # ---- Recurrence: only the (B,H)x(H,4H) hidden matmul stays in the loop. ----
    def step(t, carry):
        h_prev, c_prev = carry
        row = pl.multiple_of(t * B, B)          # sublane-aligned (B == 8)
        gates = gx_ref[pl.ds(row, B), :] + jnp.dot(
            h_prev, whh, preferred_element_type=jnp.float32)
        # i/f/o columns were pre-scaled by 0.5 in the wrapper, so a SINGLE
        # full-width tanh over all 4 gates yields:
        #   sigmoid(i,f,o) = 0.5*tanh(0.5*x) + 0.5   and   tanh(g)
        # PyTorch gate order is [i, f, g, o].
        t_all = jnp.tanh(gates)                 # one full-vreg EUP push
        s_all = 0.5 * t_all + 0.5               # cheap VPU affine
        i_g = s_all[:, 0 * H:1 * H]
        f_g = s_all[:, 1 * H:2 * H]
        g_g = t_all[:, 2 * H:3 * H]
        o_g = s_all[:, 3 * H:4 * H]
        c_new = f_g * c_prev + i_g * g_g
        h_new = o_g * jnp.tanh(c_new)
        hall_ref[pl.ds(row, B), :] = h_new
        return h_new, c_new

    h0 = jnp.zeros((B, H), jnp.float32)
    c0 = jnp.zeros((B, H), jnp.float32)
    # Full unroll is right for short sequences (LLO visibility); partial unroll
    # keeps the instruction footprint / vreg live ranges bounded if seq grows.
    unroll = True if seq <= 16 else 4
    _ = lax.fori_loop(0, seq, step, (h0, c0), unroll=unroll)

    # ---- Epilogue: one Linear matmul + one store for the whole sequence. ----
    out_ref[...] = (jnp.dot(hall_ref[...], wlin_ref[...],
                            preferred_element_type=jnp.float32)
                    + blin_ref[...])


def prepare_params(w_ih, w_hh, b_ih, b_hh, w_lin, b_lin):
    """One-time host-side weight preprocessing (call once, reuse per forward).

    PyTorch layouts in:  w_ih (4H, I), w_hh (4H, H), b_ih/b_hh (4H,),
                         w_lin (O, H), b_lin (O,).
    Returns transposed weights with the combined bias folded and the i/f/o gate
    columns pre-scaled by 0.5 (so the kernel can use one full-width tanh).
    """
    H = w_hh.shape[1]
    O = w_lin.shape[0]

    w_ih_t = jnp.transpose(w_ih).astype(jnp.float32)            # (I, 4H)
    w_hh_t = jnp.transpose(w_hh).astype(jnp.float32)            # (H, 4H)
    b = (b_ih + b_hh).reshape(1, 4 * H).astype(jnp.float32)     # (1, 4H)

    # Gate order [i, f, g, o]; scale i/f/o by 0.5, leave the tanh gate g alone.
    half = jnp.full((H,), 0.5, jnp.float32)
    one = jnp.ones((H,), jnp.float32)
    scale = jnp.concatenate([half, half, one, half]).reshape(1, 4 * H)

    w_ih_t = w_ih_t * scale
    w_hh_t = w_hh_t * scale
    b = b * scale

    w_lin_t = jnp.transpose(w_lin).astype(jnp.float32)          # (H, O)
    b_lin_r = b_lin.reshape(1, O).astype(jnp.float32)           # (1, O)
    return (w_ih_t, w_hh_t, b, w_lin_t, b_lin_r)


@jax.jit
def lstm_forward(x, params):
    """x: (seq, B, I) float32, params from prepare_params."""
    w_ih_t, w_hh_t, b, w_lin_t, b_lin_r = params
    seq, B, I = x.shape
    H = w_hh_t.shape[0]
    O = w_lin_t.shape[1]

    x_flat = x.reshape(seq * B, I).astype(jnp.float32)          # time-major rows

    kernel = functools.partial(_lstm_kernel, seq=seq, batch=B, hidden=H)

    out_flat = pl.pallas_call(
        kernel,
        out_shape=jax.ShapeDtypeStruct((seq * B, O), jnp.float32),
        in_specs=[pl.BlockSpec(memory_space=pltpu.MemorySpace.VMEM)
                  for _ in range(6)],
        out_specs=pl.BlockSpec(memory_space=pltpu.MemorySpace.VMEM),
        scratch_shapes=[
            pltpu.VMEM((seq * B, 4 * H), jnp.float32),   # gates_x staging
            pltpu.VMEM((seq * B, H), jnp.float32),       # all hidden states
        ],
    )(x_flat, w_ih_t, w_hh_t, b, w_lin_t, b_lin_r)

    return out_flat.reshape(seq, B, O)


def lstm_reference(x, w_ih, w_hh, b_ih, b_hh, w_lin, b_lin):
    """Pure-JAX reference matching PyTorch nn.LSTM + nn.Linear semantics."""
    seq, B, I = x.shape
    H = w_hh.shape[1]

    def step(carry, x_t):
        h, c = carry
        gates = x_t @ w_ih.T + b_ih + h @ w_hh.T + b_hh
        i_g = jax.nn.sigmoid(gates[:, 0 * H:1 * H])
        f_g = jax.nn.sigmoid(gates[:, 1 * H:2 * H])
        g_g = jnp.tanh(gates[:, 2 * H:3 * H])
        o_g = jax.nn.sigmoid(gates[:, 3 * H:4 * H])
        c_new = f_g * c + i_g * g_g
        h_new = o_g * jnp.tanh(c_new)
        return (h_new, c_new), h_new

    h0 = jnp.zeros((B, H), jnp.float32)
    c0 = jnp.zeros((B, H), jnp.float32)
    _, hs = lax.scan(step, (h0, c0), x)
    return hs @ w_lin.T + b_lin


if __name__ == "__main__":
    seq_len, batch = 8, 8
    H, I, O = HIDDEN_SIZE, INPUT_SIZE, OUTPUT_SIZE

    key = jax.random.PRNGKey(0)
    keys = jax.random.split(key, 7)
    bound = 1.0 / jnp.sqrt(H)   # PyTorch default init range for LSTM/Linear

    x = jax.random.normal(keys[0], (seq_len, batch, I), jnp.float32)
    w_ih = jax.random.uniform(keys[1], (4 * H, I), jnp.float32, -bound, bound)
    w_hh = jax.random.uniform(keys[2], (4 * H, H), jnp.float32, -bound, bound)
    b_ih = jax.random.uniform(keys[3], (4 * H,), jnp.float32, -bound, bound)
    b_hh = jax.random.uniform(keys[4], (4 * H,), jnp.float32, -bound, bound)
    w_lin = jax.random.uniform(keys[5], (O, H), jnp.float32, -bound, bound)
    b_lin = jax.random.uniform(keys[6], (O,), jnp.float32, -bound, bound)

    # One-time weight preprocessing, cached outside the per-call path.
    params = jax.block_until_ready(
        prepare_params(w_ih, w_hh, b_ih, b_hh, w_lin, b_lin))

    out = lstm_forward(x, params)
    out = jax.block_until_ready(out)

    ref = lstm_reference(x, w_ih, w_hh, b_ih, b_hh, w_lin, b_lin)
    assert out.shape == (seq_len, batch, O)
    assert jnp.allclose(out, ref, atol=1e-5, rtol=1e-5), "mismatch vs reference"

    print("KERNEL_OK")
</pallas_src>

<mosaic_0001>
module attributes {stable_mosaic.version = 11 : i64} {
  func.func @_lstm_kernel(%arg0: memref<64x1xf32, #tpu.memory_space<vmem>>, %arg1: memref<1x256xf32, #tpu.memory_space<vmem>>, %arg2: memref<64x256xf32, #tpu.memory_space<vmem>>, %arg3: memref<1x256xf32, #tpu.memory_space<vmem>>, %arg4: memref<64x1xf32, #tpu.memory_space<vmem>>, %arg5: memref<1x1xf32, #tpu.memory_space<vmem>>, %arg6: memref<64x1xf32, #tpu.memory_space<vmem>>, %arg7: memref<64x256xf32, #tpu.memory_space<vmem>>, %arg8: memref<64x64xf32, #tpu.memory_space<vmem>>) attributes {dimension_semantics = [], scalar_prefetch = 0 : i64, scratch_operands = 2 : i64, tpu.core_type = #tpu.core_type<tc>} {
    %c0 = arith.constant 0 : index
    %c0_0 = arith.constant 0 : index
    %0 = vector.load %arg0[%c0, %c0_0] : memref<64x1xf32, #tpu.memory_space<vmem>>, vector<64x1xf32>
    %c0_1 = arith.constant 0 : index
    %c0_2 = arith.constant 0 : index
    %1 = vector.load %arg1[%c0_1, %c0_2] : memref<1x256xf32, #tpu.memory_space<vmem>>, vector<1x256xf32>
    %2 = vector.broadcast %0 : vector<64x1xf32> to vector<64x256xf32>
    %3 = vector.broadcast %1 : vector<1x256xf32> to vector<64x256xf32>
    %4 = arith.mulf %2, %3 : vector<64x256xf32>
    %c0_3 = arith.constant 0 : index
    %c0_4 = arith.constant 0 : index
    %5 = vector.load %arg3[%c0_3, %c0_4] : memref<1x256xf32, #tpu.memory_space<vmem>>, vector<1x256xf32>
    %6 = vector.broadcast %5 : vector<1x256xf32> to vector<64x256xf32>
    %7 = arith.addf %4, %6 : vector<64x256xf32>
    %c0_5 = arith.constant 0 : index
    %c0_6 = arith.constant 0 : index
    %8 = vector.load %arg7[%c0_5, %c0_6] : memref<64x256xf32, #tpu.memory_space<vmem>>, vector<64x256xf32>
    tpu.vector_store %arg7[%c0_5, %c0_6], %7 {strides = array<i32>} : memref<64x256xf32, #tpu.memory_space<vmem>>, vector<64x256xf32>,
    %c0_7 = arith.constant 0 : index
    %c0_8 = arith.constant 0 : index
    %9 = vector.load %arg2[%c0_7, %c0_8] : memref<64x256xf32, #tpu.memory_space<vmem>>, vector<64x256xf32>
    %cst = arith.constant 0.000000e+00 : f32
    %10 = vector.broadcast %cst : f32 to vector<8x64xf32>
    %cst_9 = arith.constant 0.000000e+00 : f32
    %11 = vector.broadcast %cst_9 : f32 to vector<8x64xf32>
    %c0_i32 = arith.constant 0 : i32
    %c8_i32 = arith.constant 8 : i32
    %12 = arith.muli %c0_i32, %c8_i32 : i32
    %13 = tpu.assume_multiple %12, 8 : i32
    %14 = arith.index_cast %13 : i32 to index
    %c0_10 = arith.constant 0 : index
    %15 = vector.load %arg7[%14, %c0_10] : memref<64x256xf32, #tpu.memory_space<vmem>>, vector<8x256xf32>
    %cst_11 = arith.constant dense<0.000000e+00> : vector<8x256xf32>
    %16 = tpu.matmul %10, %9, %cst_11 {dimension_numbers = #tpu.dot_dimension_numbers<[1], [0], [0], [1], [0, 0, 1, 1], [], []>} : vector<8x64xf32>, vector<64x256xf32>, vector<8x256xf32> -> vector<8x256xf32>
    %17 = arith.addf %15, %16 : vector<8x256xf32>
    %18 = math.tanh %17 : vector<8x256xf32>
    %cst_12 = arith.constant 5.000000e-01 : f32
    %19 = vector.broadcast %cst_12 : f32 to vector<8x256xf32>
    %20 = arith.mulf %19, %18 : vector<8x256xf32>
    %cst_13 = arith.constant 5.000000e-01 : f32
    %21 = vector.broadcast %cst_13 : f32 to vector<8x256xf32>
    %22 = arith.addf %20, %21 : vector<8x256xf32>
    %23 = vector.extract_strided_slice %22 {offsets = [0, 0], sizes = [8, 64], strides = [1, 1]} : vector<8x256xf32> to vector<8x64xf32>
    %24 = vector.extract_strided_slice %22 {offsets = [0, 64], sizes = [8, 64], strides = [1, 1]} : vector<8x256xf32> to vector<8x64xf32>
    %25 = vector.extract_strided_slice %18 {offsets = [0, 128], sizes = [8, 64], strides = [1, 1]} : vector<8x256xf32> to vector<8x64xf32>
    %26 = vector.extract_strided_slice %22 {offsets = [0, 192], sizes = [8, 64], strides = [1, 1]} : vector<8x256xf32> to vector<8x64xf32>
    %27 = arith.mulf %24, %11 : vector<8x64xf32>
    %28 = arith.mulf %23, %25 : vector<8x64xf32>
    %29 = arith.addf %27, %28 : vector<8x64xf32>
    %30 = math.tanh %29 : vector<8x64xf32>
    %31 = arith.mulf %26, %30 : vector<8x64xf32>
    %32 = arith.index_cast %13 : i32 to index
    %c0_14 = arith.constant 0 : index
    %33 = vector.load %arg8[%32, %c0_14] : memref<64x64xf32, #tpu.memory_space<vmem>>, vector<8x64xf32>
    tpu.vector_store %arg8[%32, %c0_14], %31 {strides = array<i32>} : memref<64x64xf32, #tpu.memory_space<vmem>>, vector<8x64xf32>,
    %c1_i32 = arith.constant 1 : i32
    %c8_i32_15 = arith.constant 8 : i32
    %34 = arith.muli %c1_i32, %c8_i32_15 : i32
    %35 = tpu.assume_multiple %34, 8 : i32
    %36 = arith.index_cast %35 : i32 to index
    %c0_16 = arith.constant 0 : index
    %37 = vector.load %arg7[%36, %c0_16] : memref<64x256xf32, #tpu.memory_space<vmem>>, vector<8x256xf32>
    %cst_17 = arith.constant dense<0.000000e+00> : vector<8x256xf32>
    %38 = tpu.matmul %31, %9, %cst_17 {dimension_numbers = #tpu.dot_dimension_numbers<[1], [0], [0], [1], [0, 0, 1, 1], [], []>} : vector<8x64xf32>, vector<64x256xf32>, vector<8x256xf32> -> vector<8x256xf32>
    %39 = arith.addf %37, %38 : vector<8x256xf32>
    %40 = math.tanh %39 : vector<8x256xf32>
    %cst_18 = arith.constant 5.000000e-01 : f32
    %41 = vector.broadcast %cst_18 : f32 to vector<8x256xf32>
    %42 = arith.mulf %41, %40 : vector<8x256xf32>
    %cst_19 = arith.constant 5.000000e-01 : f32
    %43 = vector.broadcast %cst_19 : f32 to vector<8x256xf32>
    %44 = arith.addf %42, %43 : vector<8x256xf32>
    %45 = vector.extract_strided_slice %44 {offsets = [0, 0], sizes = [8, 64], strides = [1, 1]} : vector<8x256xf32> to vector<8x64xf32>
    %46 = vector.extract_strided_slice %44 {offsets = [0, 64], sizes = [8, 64], strides = [1, 1]} : vector<8x256xf32> to vector<8x64xf32>
    %47 = vector.extract_strided_slice %40 {offsets = [0, 128], sizes = [8, 64], strides = [1, 1]} : vector<8x256xf32> to vector<8x64xf32>
    %48 = vector.extract_strided_slice %44 {offsets = [0, 192], sizes = [8, 64], strides = [1, 1]} : vector<8x256xf32> to vector<8x64xf32>
    %49 = arith.mulf %46, %29 : vector<8x64xf32>
    %50 = arith.mulf %45, %47 : vector<8x64xf32>
    %51 = arith.addf %49, %50 : vector<8x64xf32>
    %52 = math.tanh %51 : vector<8x64xf32>
    %53 = arith.mulf %48, %52 : vector<8x64xf32>
    %54 = arith.index_cast %35 : i32 to index
    %c0_20 = arith.constant 0 : index
    %55 = vector.load %arg8[%54, %c0_20] : memref<64x64xf32, #tpu.memory_space<vmem>>, vector<8x64xf32>
    tpu.vector_store %arg8[%54, %c0_20], %53 {strides = array<i32>} : memref<64x64xf32, #tpu.memory_space<vmem>>, vector<8x64xf32>,
    %c2_i32 = arith.constant 2 : i32
    %c8_i32_21 = arith.constant 8 : i32
    %56 = arith.muli %c2_i32, %c8_i32_21 : i32
    %57 = tpu.assume_multiple %56, 8 : i32
    %58 = arith.index_cast %57 : i32 to index
    %c0_22 = arith.constant 0 : index
    %59 = vector.load %arg7[%58, %c0_22] : memref<64x256xf32, #tpu.memory_space<vmem>>, vector<8x256xf32>
    %cst_23 = arith.constant dense<0.000000e+00> : vector<8x256xf32>
    %60 = tpu.matmul %53, %9, %cst_23 {dimension_numbers = #tpu.dot_dimension_numbers<[1], [0], [0], [1], [0, 0, 1, 1], [], []>} : vector<8x64xf32>, vector<64x256xf32>, vector<8x256xf32> -> vector<8x256xf32>
    %61 = arith.addf %59, %60 : vector<8x256xf32>
    %62 = math.tanh %61 : vector<8x256xf32>
    %cst_24 = arith.constant 5.000000e-01 : f32
    %63 = vector.broadcast %cst_24 : f32 to vector<8x256xf32>
    %64 = arith.mulf %63, %62 : vector<8x256xf32>
    %cst_25 = arith.constant 5.000000e-01 : f32
    %65 = vector.broadcast %cst_25 : f32 to vector<8x256xf32>
    %66 = arith.addf %64, %65 : vector<8x256xf32>
    %67 = vector.extract_strided_slice %66 {offsets = [0, 0], sizes = [8, 64], strides = [1, 1]} : vector<8x256xf32> to vector<8x64xf32>
    %68 = vector.extract_strided_slice %66 {offsets = [0, 64], sizes = [8, 64], strides = [1, 1]} : vector<8x256xf32> to vector<8x64xf32>
    %69 = vector.extract_strided_slice %62 {offsets = [0, 128], sizes = [8, 64], strides = [1, 1]} : vector<8x256xf32> to vector<8x64xf32>
    %70 = vector.extract_strided_slice %66 {offsets = [0, 192], sizes = [8, 64], strides = [1, 1]} : vector<8x256xf32> to vector<8x64xf32>
    %71 = arith.mulf %68, %51 : vector<8x64xf32>
    %72 = arith.mulf %67, %69 : vector<8x64xf32>
    %73 = arith.addf %71, %72 : vector<8x64xf32>
    %74 = math.tanh %73 : vector<8x64xf32>
    %75 = arith.mulf %70, %74 : vector<8x64xf32>
    %76 = arith.index_cast %57 : i32 to index
    %c0_26 = arith.constant 0 : index
    %77 = vector.load %arg8[%76, %c0_26] : memref<64x64xf32, #tpu.memory_space<vmem>>, vector<8x64xf32>
    tpu.vector_store %arg8[%76, %c0_26], %75 {strides = array<i32>} : memref<64x64xf32, #tpu.memory_space<vmem>>, vector<8x64xf32>,
    %c3_i32 = arith.constant 3 : i32
    %c8_i32_27 = arith.constant 8 : i32
    %78 = arith.muli %c3_i32, %c8_i32_27 : i32
    %79 = tpu.assume_multiple %78, 8 : i32
    %80 = arith.index_cast %79 : i32 to index
    %c0_28 = arith.constant 0 : index
    %81 = vector.load %arg7[%80, %c0_28] : memref<64x256xf32, #tpu.memory_space<vmem>>, vector<8x256xf32>
    %cst_29 = arith.constant dense<0.000000e+00> : vector<8x256xf32>
    %82 = tpu.matmul %75, %9, %cst_29 {dimension_numbers = #tpu.dot_dimension_numbers<[1], [0], [0], [1], [0, 0, 1, 1], [], []>} : vector<8x64xf32>, vector<64x256xf32>, vector<8x256xf32> -> vector<8x256xf32>
    %83 = arith.addf %81, %82 : vector<8x256xf32>
    %84 = math.tanh %83 : vector<8x256xf32>
    %cst_30 = arith.constant 5.000000e-01 : f32
    %85 = vector.broadcast %cst_30 : f32 to vector<8x256xf32>
    %86 = arith.mulf %85, %84 : vector<8x256xf32>
    %cst_31 = arith.constant 5.000000e-01 : f32
    %87 = vector.broadcast %cst_31 : f32 to vector<8x256xf32>
    %88 = arith.addf %86, %87 : vector<8x256xf32>
    %89 = vector.extract_strided_slice %88 {offsets = [0, 0], sizes = [8, 64], strides = [1, 1]} : vector<8x256xf32> to vector<8x64xf32>
    %90 = vector.extract_strided_slice %88 {offsets = [0, 64], sizes = [8, 64], strides = [1, 1]} : vector<8x256xf32> to vector<8x64xf32>
    %91 = vector.extract_strided_slice %84 {offsets = [0, 128], sizes = [8, 64], strides = [1, 1]} : vector<8x256xf32> to vector<8x64xf32>
    %92 = vector.extract_strided_slice %88 {offsets = [0, 192], sizes = [8, 64], strides = [1, 1]} : vector<8x256xf32> to vector<8x64xf32>
    %93 = arith.mulf %90, %73 : vector<8x64xf32>
    %94 = arith.mulf %89, %91 : vector<8x64xf32>
    %95 = arith.addf %93, %94 : vector<8x64xf32>
    %96 = math.tanh %95 : vector<8x64xf32>
    %97 = arith.mulf %92, %96 : vector<8x64xf32>
    %98 = arith.index_cast %79 : i32 to index
    %c0_32 = arith.constant 0 : index
    %99 = vector.load %arg8[%98, %c0_32] : memref<64x64xf32, #tpu.memory_space<vmem>>, vector<8x64xf32>
    tpu.vector_store %arg8[%98, %c0_32], %97 {strides = array<i32>} : memref<64x64xf32, #tpu.memory_space<vmem>>, vector<8x64xf32>,
    %c4_i32 = arith.constant 4 : i32
    %c8_i32_33 = arith.constant 8 : i32
    %100 = arith.muli %c4_i32, %c8_i32_33 : i32
    %101 = tpu.assume_multiple %100, 8 : i32
    %102 = arith.index_cast %101 : i32 to index
    %c0_34 = arith.constant 0 : index
    %103 = vector.load %arg7[%102, %c0_34] : memref<64x256xf32, #tpu.memory_space<vmem>>, vector<8x256xf32>
    %cst_35 = arith.constant dense<0.000000e+00> : vector<8x256xf32>
    %104 = tpu.matmul %97, %9, %cst_35 {dimension_numbers = #tpu.dot_dimension_numbers<[1], [0], [0], [1], [0, 0, 1, 1], [], []>} : vector<8x64xf32>, vector<64x256xf32>, vector<8x256xf32> -> vector<8x256xf32>
    %105 = arith.addf %103, %104 : vector<8x256xf32>
    %106 = math.tanh %105 : vector<8x256xf32>
    %cst_36 = arith.constant 5.000000e-01 : f32
    %107 = vector.broadcast %cst_36 : f32 to vector<8x256xf32>
    %108 = arith.mulf %107, %106 : vector<8x256xf32>
    %cst_37 = arith.constant 5.000000e-01 : f32
    %109 = vector.broadcast %cst_37 : f32 to vector<8x256xf32>
    %110 = arith.addf %108, %109 : vector<8x256xf32>
    %111 = vector.extract_strided_slice %110 {offsets = [0, 0], sizes = [8, 64], strides = [1, 1]} : vector<8x256xf32> to vector<8x64xf32>
    %112 = vector.extract_strided_slice %110 {offsets = [0, 64], sizes = [8, 64], strides = [1, 1]} : vector<8x256xf32> to vector<8x64xf32>
    %113 = vector.extract_strided_slice %106 {offsets = [0, 128], sizes = [8, 64], strides = [1, 1]} : vector<8x256xf32> to vector<8x64xf32>
    %114 = vector.extract_strided_slice %110 {offsets = [0, 192], sizes = [8, 64], strides = [1, 1]} : vector<8x256xf32> to vector<8x64xf32>
    %115 = arith.mulf %112, %95 : vector<8x64xf32>
    %116 = arith.mulf %111, %113 : vector<8x64xf32>
    %117 = arith.addf %115, %116 : vector<8x64xf32>
    %118 = math.tanh %117 : vector<8x64xf32>
    %119 = arith.mulf %114, %118 : vector<8x64xf32>
    %120 = arith.index_cast %101 : i32 to index
    %c0_38 = arith.constant 0 : index
    %121 = vector.load %arg8[%120, %c0_38] : memref<64x64xf32, #tpu.memory_space<vmem>>, vector<8x64xf32>
    tpu.vector_store %arg8[%120, %c0_38], %119 {strides = array<i32>} : memref<64x64xf32, #tpu.memory_space<vmem>>, vector<8x64xf32>,
    %c5_i32 = arith.constant 5 : i32
    %c8_i32_39 = arith.constant 8 : i32
    %122 = arith.muli %c5_i32, %c8_i32_39 : i32
    %123 = tpu.assume_multiple %122, 8 : i32
    %124 = arith.index_cast %123 : i32 to index
    %c0_40 = arith.constant 0 : index
    %125 = vector.load %arg7[%124, %c0_40] : memref<64x256xf32, #tpu.memory_space<vmem>>, vector<8x256xf32>
    %cst_41 = arith.constant dense<0.000000e+00> : vector<8x256xf32>
    %126 = tpu.matmul %119, %9, %cst_41 {dimension_numbers = #tpu.dot_dimension_numbers<[1], [0], [0], [1], [0, 0, 1, 1], [], []>} : vector<8x64xf32>, vector<64x256xf32>, vector<8x256xf32> -> vector<8x256xf32>
    %127 = arith.addf %125, %126 : vector<8x256xf32>
    %128 = math.tanh %127 : vector<8x256xf32>
    %cst_42 = arith.constant 5.000000e-01 : f32
    %129 = vector.broadcast %cst_42 : f32 to vector<8x256xf32>
    %130 = arith.mulf %129, %128 : vector<8x256xf32>
    %cst_43 = arith.constant 5.000000e-01 : f32
    %131 = vector.broadcast %cst_43 : f32 to vector<8x256xf32>
    %132 = arith.addf %130, %131 : vector<8x256xf32>
    %133 = vector.extract_strided_slice %132 {offsets = [0, 0], sizes = [8, 64], strides = [1, 1]} : vector<8x256xf32> to vector<8x64xf32>
    %134 = vector.extract_strided_slice %132 {offsets = [0, 64], sizes = [8, 64], strides = [1, 1]} : vector<8x256xf32> to vector<8x64xf32>
    %135 = vector.extract_strided_slice %128 {offsets = [0, 128], sizes = [8, 64], strides = [1, 1]} : vector<8x256xf32> to vector<8x64xf32>
    %136 = vector.extract_strided_slice %132 {offsets = [0, 192], sizes = [8, 64], strides = [1, 1]} : vector<8x256xf32> to vector<8x64xf32>
    %137 = arith.mulf %134, %117 : vector<8x64xf32>
    %138 = arith.mulf %133, %135 : vector<8x64xf32>
    %139 = arith.addf %137, %138 : vector<8x64xf32>
    %140 = math.tanh %139 : vector<8x64xf32>
    %141 = arith.mulf %136, %140 : vector<8x64xf32>
    %142 = arith.index_cast %123 : i32 to index
    %c0_44 = arith.constant 0 : index
    %143 = vector.load %arg8[%142, %c0_44] : memref<64x64xf32, #tpu.memory_space<vmem>>, vector<8x64xf32>
    tpu.vector_store %arg8[%142, %c0_44], %141 {strides = array<i32>} : memref<64x64xf32, #tpu.memory_space<vmem>>, vector<8x64xf32>,
    %c6_i32 = arith.constant 6 : i32
    %c8_i32_45 = arith.constant 8 : i32
    %144 = arith.muli %c6_i32, %c8_i32_45 : i32
    %145 = tpu.assume_multiple %144, 8 : i32
    %146 = arith.index_cast %145 : i32 to index
    %c0_46 = arith.constant 0 : index
    %147 = vector.load %arg7[%146, %c0_46] : memref<64x256xf32, #tpu.memory_space<vmem>>, vector<8x256xf32>
    %cst_47 = arith.constant dense<0.000000e+00> : vector<8x256xf32>
    %148 = tpu.matmul %141, %9, %cst_47 {dimension_numbers = #tpu.dot_dimension_numbers<[1], [0], [0], [1], [0, 0, 1, 1], [], []>} : vector<8x64xf32>, vector<64x256xf32>, vector<8x256xf32> -> vector<8x256xf32>
    %149 = arith.addf %147, %148 : vector<8x256xf32>
    %150 = math.tanh %149 : vector<8x256xf32>
    %cst_48 = arith.constant 5.000000e-01 : f32
    %151 = vector.broadcast %cst_48 : f32 to vector<8x256xf32>
    %152 = arith.mulf %151, %150 : vector<8x256xf32>
    %cst_49 = arith.constant 5.000000e-01 : f32
    %153 = vector.broadcast %cst_49 : f32 to vector<8x256xf32>
    %154 = arith.addf %152, %153 : vector<8x256xf32>
    %155 = vector.extract_strided_slice %154 {offsets = [0, 0], sizes = [8, 64], strides = [1, 1]} : vector<8x256xf32> to vector<8x64xf32>
    %156 = vector.extract_strided_slice %154 {offsets = [0, 64], sizes = [8, 64], strides = [1, 1]} : vector<8x256xf32> to vector<8x64xf32>
    %157 = vector.extract_strided_slice %150 {offsets = [0, 128], sizes = [8, 64], strides = [1, 1]} : vector<8x256xf32> to vector<8x64xf32>
    %158 = vector.extract_strided_slice %154 {offsets = [0, 192], sizes = [8, 64], strides = [1, 1]} : vector<8x256xf32> to vector<8x64xf32>
    %159 = arith.mulf %156, %139 : vector<8x64xf32>
    %160 = arith.mulf %155, %157 : vector<8x64xf32>
    %161 = arith.addf %159, %160 : vector<8x64xf32>
    %162 = math.tanh %161 : vector<8x64xf32>
    %163 = arith.mulf %158, %162 : vector<8x64xf32>
    %164 = arith.index_cast %145 : i32 to index
    %c0_50 = arith.constant 0 : index
    %165 = vector.load %arg8[%164, %c0_50] : memref<64x64xf32, #tpu.memory_space<vmem>>, vector<8x64xf32>
    tpu.vector_store %arg8[%164, %c0_50], %163 {strides = array<i32>} : memref<64x64xf32, #tpu.memory_space<vmem>>, vector<8x64xf32>,
    %c7_i32 = arith.constant 7 : i32
    %c8_i32_51 = arith.constant 8 : i32
    %166 = arith.muli %c7_i32, %c8_i32_51 : i32
    %167 = tpu.assume_multiple %166, 8 : i32
    %168 = arith.index_cast %167 : i32 to index
    %c0_52 = arith.constant 0 : index
    %169 = vector.load %arg7[%168, %c0_52] : memref<64x256xf32, #tpu.memory_space<vmem>>, vector<8x256xf32>
    %cst_53 = arith.constant dense<0.000000e+00> : vector<8x256xf32>
    %170 = tpu.matmul %163, %9, %cst_53 {dimension_numbers = #tpu.dot_dimension_numbers<[1], [0], [0], [1], [0, 0, 1, 1], [], []>} : vector<8x64xf32>, vector<64x256xf32>, vector<8x256xf32> -> vector<8x256xf32>
    %171 = arith.addf %169, %170 : vector<8x256xf32>
    %172 = math.tanh %171 : vector<8x256xf32>
    %cst_54 = arith.constant 5.000000e-01 : f32
    %173 = vector.broadcast %cst_54 : f32 to vector<8x256xf32>
    %174 = arith.mulf %173, %172 : vector<8x256xf32>
    %cst_55 = arith.constant 5.000000e-01 : f32
    %175 = vector.broadcast %cst_55 : f32 to vector<8x256xf32>
    %176 = arith.addf %174, %175 : vector<8x256xf32>
    %177 = vector.extract_strided_slice %176 {offsets = [0, 0], sizes = [8, 64], strides = [1, 1]} : vector<8x256xf32> to vector<8x64xf32>
    %178 = vector.extract_strided_slice %176 {offsets = [0, 64], sizes = [8, 64], strides = [1, 1]} : vector<8x256xf32> to vector<8x64xf32>
    %179 = vector.extract_strided_slice %172 {offsets = [0, 128], sizes = [8, 64], strides = [1, 1]} : vector<8x256xf32> to vector<8x64xf32>
    %180 = vector.extract_strided_slice %176 {offsets = [0, 192], sizes = [8, 64], strides = [1, 1]} : vector<8x256xf32> to vector<8x64xf32>
    %181 = arith.mulf %178, %161 : vector<8x64xf32>
    %182 = arith.mulf %177, %179 : vector<8x64xf32>
    %183 = arith.addf %181, %182 : vector<8x64xf32>
    %184 = math.tanh %183 : vector<8x64xf32>
    %185 = arith.mulf %180, %184 : vector<8x64xf32>
    %186 = arith.index_cast %167 : i32 to index
    %c0_56 = arith.constant 0 : index
    %187 = vector.load %arg8[%186, %c0_56] : memref<64x64xf32, #tpu.memory_space<vmem>>, vector<8x64xf32>
    tpu.vector_store %arg8[%186, %c0_56], %185 {strides = array<i32>} : memref<64x64xf32, #tpu.memory_space<vmem>>, vector<8x64xf32>,
    %c8_i32_57 = arith.constant 8 : i32
    %c0_58 = arith.constant 0 : index
    %c0_59 = arith.constant 0 : index
    %188 = vector.load %arg8[%c0_58, %c0_59] : memref<64x64xf32, #tpu.memory_space<vmem>>, vector<64x64xf32>
    %c0_60 = arith.constant 0 : index
    %c0_61 = arith.constant 0 : index
    %189 = vector.load %arg4[%c0_60, %c0_61] : memref<64x1xf32, #tpu.memory_space<vmem>>, vector<64x1xf32>
    %cst_62 = arith.constant dense<0.000000e+00> : vector<64x1xf32>
    %190 = tpu.matmul %188, %189, %cst_62 {dimension_numbers = #tpu.dot_dimension_numbers<[1], [0], [0], [1], [0, 0, 1, 1], [], []>} : vector<64x64xf32>, vector<64x1xf32>, vector<64x1xf32> -> vector<64x1xf32>
    %c0_63 = arith.constant 0 : index
    %c0_64 = arith.constant 0 : index
    %191 = vector.load %arg5[%c0_63, %c0_64] : memref<1x1xf32, #tpu.memory_space<vmem>>, vector<1x1xf32>
    %192 = vector.broadcast %191 : vector<1x1xf32> to vector<64x1xf32>
    %193 = arith.addf %190, %192 : vector<64x1xf32>
    %c0_65 = arith.constant 0 : index
    %c0_66 = arith.constant 0 : index
    %194 = vector.load %arg6[%c0_65, %c0_66] : memref<64x1xf32, #tpu.memory_space<vmem>>, vector<64x1xf32>
    tpu.vector_store %arg6[%c0_65, %c0_66], %193 {strides = array<i32>} : memref<64x1xf32, #tpu.memory_space<vmem>>, vector<64x1xf32>,
    return
  }
}

</mosaic_0001>

<llo_original>
// kernel: lstm_forward.1
$region0: #{lstm_forward.1}
  #allocation0 [shape = 'u32[]', space=smem, size = 0x4, offset = 0x4, fixed_abs, tag = 'smem constant byte address 0x4 - core index']
  #allocation1 [shape = 'u32[144,128]{1,0:T(1,128)}', space=vmem, size = 0x12000, scoped, tag = 'internal scratch']
  #allocation2 [shape = 'f32[64,256]{1,0:T(8,128)}', space=vmem, size = 0x10000, scoped, tag = 'scratch operand']
  #allocation3 [shape = 'f32[64,64]{1,0:T(8,128)}', space=vmem, size = 0x8000, scoped, tag = 'scratch operand']
  #allocation4 [shape = 'f32[1,1]{1,0:T(1,128)S(1)}', space=vmem, size = 0x200, scoped, tag = 'scoped memory for lstm_forward.1']
  %s0 = inlined_call_operand.vmem [shape: f32[64,1], index: 0, kind: input, shape index: {}]
  %s1 = inlined_call_operand.vmem [shape: f32[1,256], index: 1, kind: input, shape index: {}]
  %s2 = inlined_call_operand.vmem [shape: f32[64,256], index: 2, kind: input, shape index: {}]
  %s3 = inlined_call_operand.vmem [shape: f32[1,256], index: 3, kind: input, shape index: {}]
  %s4 = inlined_call_operand.vmem [shape: f32[64,1], index: 4, kind: input, shape index: {}]
  %s5 = inlined_call_operand.<no memory space> [shape: f32[1,1], index: 5, kind: input, shape index: {}]
  %s6 = inlined_call_operand.vmem [shape: f32[64,1], index: 6, kind: output, shape index: {}]
  %s7 = sld [smem:[#allocation0]]
  $region34: #{lstm_forward.1} parent=0
    _
  %s9 = ssub.s32 1, %s7
  %s10 = scalar_select 0, %s9, %s7
  %v11 = vstv %s5
  %12 = vst [vmem:[#allocation4] sm:$0x1] %v11
  // Predicated region
  $region2: #{lstm_forward.1} parent=0 // pred_check
    _
  $region3: #{lstm_forward.1} parent=0 // pred_check_branch
    %14 = sbr.rel (0) target = $region5
  $region4: #{lstm_forward.1} parent=0 // pred_region
    _
  $region5: #{lstm_forward.1} parent=0 // pred_fallthru
    _
  // Predicated region
  $region6: #{lstm_forward.1} parent=0 // pred_check
    _
  $region7: #{lstm_forward.1} parent=0 // pred_check_branch
    %16 = sbr.rel (0) target = $region9
  $region8: #{lstm_forward.1} parent=0 // pred_region
    _
  $region9: #{lstm_forward.1} parent=0 // pred_fallthru
    _
  // Predicated region
  $region10: #{lstm_forward.1} parent=0 // pred_check
    _
  $region11: #{lstm_forward.1} parent=0 // pred_check_branch
    %18 = sbr.rel (0) target = $region13
  $region12: #{lstm_forward.1} parent=0 // pred_region
    _
  $region13: #{lstm_forward.1} parent=0 // pred_fallthru
    _
  // Predicated region
  $region14: #{lstm_forward.1} parent=0 // pred_check
    _
  $region15: #{lstm_forward.1} parent=0 // pred_check_branch
    %20 = sbr.rel (0) target = $region17
  $region16: #{lstm_forward.1} parent=0 // pred_region
    _
  $region17: #{lstm_forward.1} parent=0 // pred_fallthru
    _
  // Predicated region
  $region18: #{lstm_forward.1} parent=0 // pred_check
    _
  $region19: #{lstm_forward.1} parent=0 // pred_check_branch
    %22 = sbr.rel (0) target = $region21
  $region20: #{lstm_forward.1} parent=0 // pred_region
    _
  $region21: #{lstm_forward.1} parent=0 // pred_fallthru
    _
  // Predicated region
  $region22: #{lstm_forward.1} parent=0 // pred_check
    _
  $region23: #{lstm_forward.1} parent=0 // pred_check_branch
    %24 = sbr.rel (0) target = $region25
  $region24: #{lstm_forward.1} parent=0 // pred_region
    _
  $region25: #{lstm_forward.1} parent=0 // pred_fallthru
    _
  %v25 = vld [vmem:[%s0] sm:$0xff]
  %v26 = vld [vmem:[%s0 + $0x8] sm:$0xff]
  %v27 = vld [vmem:[%s0 + $0x10] sm:$0xff]
  %v28 = vld [vmem:[%s0 + $0x18] sm:$0xff]
  %v29 = vld [vmem:[%s0 + $0x20] sm:$0xff]
  %v30 = vld [vmem:[%s0 + $0x28] sm:$0xff]
  %v31 = vld [vmem:[%s0 + $0x30] sm:$0xff]
  %v32 = vld [vmem:[%s0 + $0x38] sm:$0xff]
  %v33 = vld [vmem:[%s1] sm:$0x3]
  %35 = vset.pattern.permute.xlu0 0
  %36 = vperm.xlu0 %35, %v25
  %v37 = vpop.permute.xlu0 %36
  %40 = vset.pattern.permute.xlu0 0
  %41 = vperm.xlu0 %40, %v26
  %v42 = vpop.permute.xlu0 %41
  %45 = vset.pattern.permute.xlu0 0
  %46 = vperm.xlu0 %45, %v27
  %v47 = vpop.permute.xlu0 %46
  %50 = vset.pattern.permute.xlu0 0
  %51 = vperm.xlu0 %50, %v28
  %v52 = vpop.permute.xlu0 %51
  %55 = vset.pattern.permute.xlu0 0
  %56 = vperm.xlu0 %55, %v29
  %v57 = vpop.permute.xlu0 %56
  %60 = vset.pattern.permute.xlu0 0
  %61 = vperm.xlu0 %60, %v30
  %v62 = vpop.permute.xlu0 %61
  %65 = vset.pattern.permute.xlu0 0
  %66 = vperm.xlu0 %65, %v31
  %v67 = vpop.permute.xlu0 %66
  %70 = vset.pattern.permute.xlu0 0
  %71 = vperm.xlu0 %70, %v32
  %v72 = vpop.permute.xlu0 %71
  %v75 = vlaneseq
  %v76 = vshrl.u32 %v75, 7
  %v77 = vsub.s32 0, %v76
  %v78 = vrot.slane %v33, %v77
  %v79 = vlaneseq
  %v80 = vshrl.u32 %v79, 7
  %v81 = vsub.s32 1, %v80
  %v82 = vrot.slane %v33, %v81
  %v85 = vmul.f32 %v37, %v78
  %v86 = vmul.f32 %v37, %v82
  %v87 = vmul.f32 %v42, %v78
  %v88 = vmul.f32 %v42, %v82
  %v89 = vmul.f32 %v47, %v78
  %v90 = vmul.f32 %v47, %v82
  %v91 = vmul.f32 %v52, %v78
  %v92 = vmul.f32 %v52, %v82
  %v93 = vmul.f32 %v57, %v78
  %v94 = vmul.f32 %v57, %v82
  %v95 = vmul.f32 %v62, %v78
  %v96 = vmul.f32 %v62, %v82
  %v97 = vmul.f32 %v67, %v78
  %v98 = vmul.f32 %v67, %v82
  %v99 = vmul.f32 %v72, %v78
  %v100 = vmul.f32 %v72, %v82
  %v101 = vld [vmem:[%s3] sm:$0x3]
  %v103 = vlaneseq
  %v104 = vshrl.u32 %v103, 7
  %v105 = vsub.s32 0, %v104
  %v106 = vrot.slane %v101, %v105
  %v107 = vlaneseq
  %v108 = vshrl.u32 %v107, 7
  %v109 = vsub.s32 1, %v108
  %v110 = vrot.slane %v101, %v109
  %v113 = vadd.f32 %v85, %v106
  %v114 = vadd.f32 %v86, %v110
  %v115 = vadd.f32 %v87, %v106
  %v116 = vadd.f32 %v88, %v110
  %v117 = vadd.f32 %v89, %v106
  %v118 = vadd.f32 %v90, %v110
  %v119 = vadd.f32 %v91, %v106
  %v120 = vadd.f32 %v92, %v110
  %v121 = vadd.f32 %v93, %v106
  %v122 = vadd.f32 %v94, %v110
  %v123 = vadd.f32 %v95, %v106
  %v124 = vadd.f32 %v96, %v110
  %v125 = vadd.f32 %v97, %v106
  %v126 = vadd.f32 %v98, %v110
  %v127 = vadd.f32 %v99, %v106
  %v128 = vadd.f32 %v100, %v110
  %129 = vst [vmem:[#allocation2] sm:$0xff] %v113
  %130 = vst [vmem:[#allocation2 + $0x8] sm:$0xff] %v114
  %131 = vst [vmem:[#allocation2 + $0x10] sm:$0xff] %v115
  %132 = vst [vmem:[#allocation2 + $0x18] sm:$0xff] %v116
  %133 = vst [vmem:[#allocation2 + $0x20] sm:$0xff] %v117
  %134 = vst [vmem:[#allocation2 + $0x28] sm:$0xff] %v118
  %135 = vst [vmem:[#allocation2 + $0x30] sm:$0xff] %v119
  %136 = vst [vmem:[#allocation2 + $0x38] sm:$0xff] %v120
  %137 = vst [vmem:[#allocation2 + $0x40] sm:$0xff] %v121
  %138 = vst [vmem:[#allocation2 + $0x48] sm:$0xff] %v122
  %139 = vst [vmem:[#allocation2 + $0x50] sm:$0xff] %v123
  %140 = vst [vmem:[#allocation2 + $0x58] sm:$0xff] %v124
  %141 = vst [vmem:[#allocation2 + $0x60] sm:$0xff] %v125
  %142 = vst [vmem:[#allocation2 + $0x68] sm:$0xff] %v126
  %143 = vst [vmem:[#allocation2 + $0x70] sm:$0xff] %v127
  %144 = vst [vmem:[#allocation2 + $0x78] sm:$0xff] %v128
  %v145 = vld [vmem:[%s2] sm:$0xff]
  %v146 = vld [vmem:[%s2 + $0x8] sm:$0xff]
  %v147 = vld [vmem:[%s2 + $0x10] sm:$0xff]
  %v148 = vld [vmem:[%s2 + $0x18] sm:$0xff]
  %v149 = vld [vmem:[%s2 + $0x20] sm:$0xff]
  %v150 = vld [vmem:[%s2 + $0x28] sm:$0xff]
  %v151 = vld [vmem:[%s2 + $0x30] sm:$0xff]
  %v152 = vld [vmem:[%s2 + $0x38] sm:$0xff]
  %v153 = vld [vmem:[%s2 + $0x40] sm:$0xff]
  %v154 = vld [vmem:[%s2 + $0x48] sm:$0xff]
  %v155 = vld [vmem:[%s2 + $0x50] sm:$0xff]
  %v156 = vld [vmem:[%s2 + $0x58] sm:$0xff]
  %v157 = vld [vmem:[%s2 + $0x60] sm:$0xff]
  %v158 = vld [vmem:[%s2 + $0x68] sm:$0xff]
  %v159 = vld [vmem:[%s2 + $0x70] sm:$0xff]
  %v160 = vld [vmem:[%s2 + $0x78] sm:$0xff]
  %s161 = smul.u32 0, 2
  %s162 = smul.addr %s161, 8
  %s163 = scalar_lea.vmem [#allocation2], %s162
  %v164 = vld [vmem:[%s163] sm:$0xff]
  %v165 = vld [vmem:[%s163 + $0x8] sm:$0xff]
  %vm166 = vcmask 523264
  %v168 = vsel %vm166, 0.0, 0
  %170 = vmatprep.subr.mxu0 %v146
  %171 = vmatpush1.msra.mxu0 %v145
  %172 = vmatprep.subr.mxu0 %v148
  %173 = vmatpush1.msra.mxu0 %v147
  %174 = vmatprep.subr.mxu0 %v150
  %175 = vmatpush1.msra.mxu0 %v149
  %176 = vmatprep.subr.mxu0 %v152
  %177 = vmatpush1.msra.mxu0 %v151
  %178 = vmatprep.subr.mxu0 %v154
  %179 = vmatpush1.msra.mxu0 %v153
  %180 = vmatprep.subr.mxu0 %v156
  %181 = vmatpush1.msra.mxu0 %v155
  %182 = vmatprep.subr.mxu0 %v158
  %183 = vmatpush1.msra.mxu0 %v157
  %184 = vmatprep.subr.mxu0 %v160
  %185 = vmatpush1.msra.mxu0 %v159
  %186 = vmatprep.subr.mxu0 0.0
  %187 = vmatpush1.msra.mxu0 0.0
  %188 = vmatprep.subr.mxu0 0.0
  %189 = vmatpush1.msra.mxu0 0.0
  %190 = vmatprep.subr.mxu0 0.0
  %191 = vmatpush1.msra.mxu0 0.0
  %192 = vmatprep.subr.mxu0 0.0
  %193 = vmatpush1.msra.mxu0 0.0
  %194 = vmatprep.subr.mxu0 0.0
  %195 = vmatpush1.msra.mxu0 0.0
  %196 = vmatprep.subr.mxu0 0.0
  %197 = vmatpush1.msra.mxu0 0.0
  %198 = vmatprep.subr.mxu0 0.0
  %199 = vmatpush1.msra.mxu0 0.0
  %200 = vmatprep.subr.mxu0 0.0
  %201 = vmatpush1.msra.mxu0 0.0
  %202 = vmatprep.subr.mxu0 0.0
  %203 = vmatpush1.msra.mxu0 0.0
  %204 = vmatprep.subr.mxu0 0.0
  %205 = vmatpush1.msra.mxu0 0.0
  %206 = vmatprep.subr.mxu0 0.0
  %207 = vmatpush1.msra.mxu0 0.0
  %208 = vmatprep.subr.mxu0 0.0
  %209 = vmatpush1.msra.mxu0 0.0
  %210 = vmatprep.subr.mxu0 0.0
  %211 = vmatpush1.msra.mxu0 0.0
  %212 = vmatprep.subr.mxu0 0.0
  %213 = vmatpush1.msra.mxu0 0.0
  %214 = vmatprep.subr.mxu0 0.0
  %215 = vmatpush1.msra.mxu0 0.0
  %216 = vmatprep.subr.mxu0 0.0
  %217 = vmatpush1.msra.mxu0 0.0
  %218 = vmatprep.subr.mxu0 0.0
  %219 = vmatpush1.msra.mxu0 0.0
  %220 = vmatprep.subr.mxu0 0.0
  %221 = vmatpush1.msra.mxu0 0.0
  %222 = vmatprep.subr.mxu0 0.0
  %223 = vmatpush1.msra.mxu0 0.0
  %224 = vmatprep.subr.mxu0 0.0
  %225 = vmatpush1.msra.mxu0 0.0
  %226 = vmatprep.subr.mxu0 0.0
  %227 = vmatpush1.msra.mxu0 0.0
  %228 = vmatprep.subr.mxu0 0.0
  %229 = vmatpush1.msra.mxu0 0.0
  %230 = vmatprep.subr.mxu0 0.0
  %231 = vmatpush1.msra.mxu0 0.0
  %232 = vmatprep.subr.mxu0 0.0
  %233 = vmatpush1.msra.mxu0 0.0
  %234 = vmatprep.mubr.f32.mxu0 0.0
  %235 = vmatmul.mubr.f32.gmra.mrb[0].mxu0 %v168
  %v236 = vpop.f32.mrb[0].mxu0
  %v237 = vadd.f32 0.0, %v236
  %v238 = vpop.f32.mrb[0].mxu0
  %v239 = vadd.f32 0.0, %v238
  %240 = vdwg.mxu0
  %v241 = vadd.f32 %v164, %v237
  %v242 = vadd.f32 %v165, %v239
  %v243 = vtanh.pop %v241
  %v244 = vtanh.pop %v242
  %v245 = vmul.f32 %v243, 0.5
  %v246 = vmul.f32 %v244, 0.5
  %v247 = vadd.f32 %v245, 0.5
  %v248 = vadd.f32 %v246, 0.5
  %v249 = vmul.f32 %v247, 0.0
  %v250 = vmul.f32 %v247, %v244
  %252 = vrot.lane.b32.xlu0 %v250, 64
  %v253 = vpop.permute.xlu0 %252
  %v255 = vadd.f32 %v249, %v253
  %v256 = vtanh.pop %v255
  %v257 = vmul.f32 %v248, %v256
  %259 = vrot.lane.b32.xlu0 %v257, 64
  %v260 = vpop.permute.xlu0 %259
  %262 = vst.msk [vmem:[#allocation3] sm:$0xff] %vm166, %v260
  %s263 = smul.u32 1, 2
  %s264 = smul.addr %s263, 8
  %s265 = scalar_lea.vmem [#allocation2], %s264
  %v266 = vld [vmem:[%s265] sm:$0xff]
  %v267 = vld [vmem:[%s265 + $0x8] sm:$0xff]
  %v268 = vsel %vm166, %v260, 0
  %270 = vmatprep.subr.mxu0 %v146
  %271 = vmatpush1.msra.mxu0 %v145
  %272 = vmatprep.subr.mxu0 %v148
  %273 = vmatpush1.msra.mxu0 %v147
  %274 = vmatprep.subr.mxu0 %v150
  %275 = vmatpush1.msra.mxu0 %v149
  %276 = vmatprep.subr.mxu0 %v152
  %277 = vmatpush1.msra.mxu0 %v151
  %278 = vmatprep.subr.mxu0 %v154
  %279 = vmatpush1.msra.mxu0 %v153
  %280 = vmatprep.subr.mxu0 %v156
  %281 = vmatpush1.msra.mxu0 %v155
  %282 = vmatprep.subr.mxu0 %v158
  %283 = vmatpush1.msra.mxu0 %v157
  %284 = vmatprep.subr.mxu0 %v160
  %285 = vmatpush1.msra.mxu0 %v159
  %286 = vmatprep.subr.mxu0 0.0
  %287 = vmatpush1.msra.mxu0 0.0
  %288 = vmatprep.subr.mxu0 0.0
  %289 = vmatpush1.msra.mxu0 0.0
  %290 = vmatprep.subr.mxu0 0.0
  %291 = vmatpush1.msra.mxu0 0.0
  %292 = vmatprep.subr.mxu0 0.0
  %293 = vmatpush1.msra.mxu0 0.0
  %294 = vmatprep.subr.mxu0 0.0
  %295 = vmatpush1.msra.mxu0 0.0
  %296 = vmatprep.subr.mxu0 0.0
  %297 = vmatpush1.msra.mxu0 0.0
  %298 = vmatprep.subr.mxu0 0.0
  %299 = vmatpush1.msra.mxu0 0.0
  %300 = vmatprep.subr.mxu0 0.0
  %301 = vmatpush1.msra.mxu0 0.0
  %302 = vmatprep.subr.mxu0 0.0
  %303 = vmatpush1.msra.mxu0 0.0
  %304 = vmatprep.subr.mxu0 0.0
  %305 = vmatpush1.msra.mxu0 0.0
  %306 = vmatprep.subr.mxu0 0.0
  %307 = vmatpush1.msra.mxu0 0.0
  %308 = vmatprep.subr.mxu0 0.0
  %309 = vmatpush1.msra.mxu0 0.0
  %310 = vmatprep.subr.mxu0 0.0
  %311 = vmatpush1.msra.mxu0 0.0
  %312 = vmatprep.subr.mxu0 0.0
  %313 = vmatpush1.msra.mxu0 0.0
  %314 = vmatprep.subr.mxu0 0.0
  %315 = vmatpush1.msra.mxu0 0.0
  %316 = vmatprep.subr.mxu0 0.0
  %317 = vmatpush1.msra.mxu0 0.0
  %318 = vmatprep.subr.mxu0 0.0
  %319 = vmatpush1.msra.mxu0 0.0
  %320 = vmatprep.subr.mxu0 0.0
  %321 = vmatpush1.msra.mxu0 0.0
  %322 = vmatprep.subr.mxu0 0.0
  %323 = vmatpush1.msra.mxu0 0.0
  %324 = vmatprep.subr.mxu0 0.0
  %325 = vmatpush1.msra.mxu0 0.0
  %326 = vmatprep.subr.mxu0 0.0
  %327 = vmatpush1.msra.mxu0 0.0
  %328 = vmatprep.subr.mxu0 0.0
  %329 = vmatpush1.msra.mxu0 0.0
  %330 = vmatprep.subr.mxu0 0.0
  %331 = vmatpush1.msra.mxu0 0.0
  %332 = vmatprep.subr.mxu0 0.0
  %333 = vmatpush1.msra.mxu0 0.0
  %334 = vmatprep.mubr.f32.mxu0 0.0
  %335 = vmatmul.mubr.f32.gmra.mrb[0].mxu0 %v268
  %v336 = vpop.f32.mrb[0].mxu0
  %v337 = vadd.f32 0.0, %v336
  %v338 = vpop.f32.mrb[0].mxu0
  %v339 = vadd.f32 0.0, %v338
  %340 = vdwg.mxu0
  %v341 = vadd.f32 %v266, %v337
  %v342 = vadd.f32 %v267, %v339
  %v343 = vtanh.pop %v341
  %v344 = vtanh.pop %v342
  %v345 = vmul.f32 %v343, 0.5
  %v346 = vmul.f32 %v344, 0.5
  %v347 = vadd.f32 %v345, 0.5
  %v348 = vadd.f32 %v346, 0.5
  %v349 = vmul.f32 %v347, %v255
  %v350 = vmul.f32 %v347, %v344
  %352 = vrot.lane.b32.xlu0 %v350, 64
  %v353 = vpop.permute.xlu0 %352
  %v355 = vadd.f32 %v349, %v353
  %v356 = vtanh.pop %v355
  %v357 = vmul.f32 %v348, %v356
  %359 = vrot.lane.b32.xlu0 %v357, 64
  %v360 = vpop.permute.xlu0 %359
  %s362 = scalar_lea.vmem [#allocation3], 8
  %363 = vst.msk [vmem:[%s362] sm:$0xff] %vm166, %v360
  %s364 = smul.u32 2, 2
  %s365 = smul.addr %s364, 8
  %s366 = scalar_lea.vmem [#allocation2], %s365
  %v367 = vld [vmem:[%s366] sm:$0xff]
  %v368 = vld [vmem:[%s366 + $0x8] sm:$0xff]
  %v369 = vsel %vm166, %v360, 0
  %371 = vmatprep.subr.mxu0 %v146
  %372 = vmatpush1.msra.mxu0 %v145
  %373 = vmatprep.subr.mxu0 %v148
  %374 = vmatpush1.msra.mxu0 %v147
  %375 = vmatprep.subr.mxu0 %v150
  %376 = vmatpush1.msra.mxu0 %v149
  %377 = vmatprep.subr.mxu0 %v152
  %378 = vmatpush1.msra.mxu0 %v151
  %379 = vmatprep.subr.mxu0 %v154
  %380 = vmatpush1.msra.mxu0 %v153
  %381 = vmatprep.subr.mxu0 %v156
  %382 = vmatpush1.msra.mxu0 %v155
  %383 = vmatprep.subr.mxu0 %v158
  %384 = vmatpush1.msra.mxu0 %v157
  %385 = vmatprep.subr.mxu0 %v160
  %386 = vmatpush1.msra.mxu0 %v159
  %387 = vmatprep.subr.mxu0 0.0
  %388 = vmatpush1.msra.mxu0 0.0
  %389 = vmatprep.subr.mxu0 0.0
  %390 = vmatpush1.msra.mxu0 0.0
  %391 = vmatprep.subr.mxu0 0.0
  %392 = vmatpush1.msra.mxu0 0.0
  %393 = vmatprep.subr.mxu0 0.0
  %394 = vmatpush1.msra.mxu0 0.0
  %395 = vmatprep.subr.mxu0 0.0
  %396 = vmatpush1.msra.mxu0 0.0
  %397 = vmatprep.subr.mxu0 0.0
  %398 = vmatpush1.msra.mxu0 0.0
  %399 = vmatprep.subr.mxu0 0.0
  %400 = vmatpush1.msra.mxu0 0.0
  %401 = vmatprep.subr.mxu0 0.0
  %402 = vmatpush1.msra.mxu0 0.0
  %403 = vmatprep.subr.mxu0 0.0
  %404 = vmatpush1.msra.mxu0 0.0
  %405 = vmatprep.subr.mxu0 0.0
  %406 = vmatpush1.msra.mxu0 0.0
  %407 = vmatprep.subr.mxu0 0.0
  %408 = vmatpush1.msra.mxu0 0.0
  %409 = vmatprep.subr.mxu0 0.0
  %410 = vmatpush1.msra.mxu0 0.0
  %411 = vmatprep.subr.mxu0 0.0
  %412 = vmatpush1.msra.mxu0 0.0
  %413 = vmatprep.subr.mxu0 0.0
  %414 = vmatpush1.msra.mxu0 0.0
  %415 = vmatprep.subr.mxu0 0.0
  %416 = vmatpush1.msra.mxu0 0.0
  %417 = vmatprep.subr.mxu0 0.0
  %418 = vmatpush1.msra.mxu0 0.0
  %419 = vmatprep.subr.mxu0 0.0
  %420 = vmatpush1.msra.mxu0 0.0
  %421 = vmatprep.subr.mxu0 0.0
  %422 = vmatpush1.msra.mxu0 0.0
  %423 = vmatprep.subr.mxu0 0.0
  %424 = vmatpush1.msra.mxu0 0.0
  %425 = vmatprep.subr.mxu0 0.0
  %426 = vmatpush1.msra.mxu0 0.0
  %427 = vmatprep.subr.mxu0 0.0
  %428 = vmatpush1.msra.mxu0 0.0
  %429 = vmatprep.subr.mxu0 0.0
  %430 = vmatpush1.msra.mxu0 0.0
  %431 = vmatprep.subr.mxu0 0.0
  %432 = vmatpush1.msra.mxu0 0.0
  %433 = vmatprep.subr.mxu0 0.0
  %434 = vmatpush1.msra.mxu0 0.0
  %435 = vmatprep.mubr.f32.mxu0 0.0
  %436 = vmatmul.mubr.f32.gmra.mrb[0].mxu0 %v369
  %v437 = vpop.f32.mrb[0].mxu0
  %v438 = vadd.f32 0.0, %v437
  %v439 = vpop.f32.mrb[0].mxu0
  %v440 = vadd.f32 0.0, %v439
  %441 = vdwg.mxu0
  %v442 = vadd.f32 %v367, %v438
  %v443 = vadd.f32 %v368, %v440
  %v444 = vtanh.pop %v442
  %v445 = vtanh.pop %v443
  %v446 = vmul.f32 %v444, 0.5
  %v447 = vmul.f32 %v445, 0.5
  %v448 = vadd.f32 %v446, 0.5
  %v449 = vadd.f32 %v447, 0.5
  %v450 = vmul.f32 %v448, %v355
  %v451 = vmul.f32 %v448, %v445
  %453 = vrot.lane.b32.xlu0 %v451, 64
  %v454 = vpop.permute.xlu0 %453
  %v456 = vadd.f32 %v450, %v454
  %v457 = vtanh.pop %v456
  %v458 = vmul.f32 %v449, %v457
  %460 = vrot.lane.b32.xlu0 %v458, 64
  %v461 = vpop.permute.xlu0 %460
  %s463 = scalar_lea.vmem [#allocation3], 16
  %464 = vst.msk [vmem:[%s463] sm:$0xff] %vm166, %v461
  %s465 = smul.u32 3, 2
  %s466 = smul.addr %s465, 8
  %s467 = scalar_lea.vmem [#allocation2], %s466
  %v468 = vld [vmem:[%s467] sm:$0xff]
  %v469 = vld [vmem:[%s467 + $0x8] sm:$0xff]
  %v470 = vsel %vm166, %v461, 0
  %472 = vmatprep.subr.mxu0 %v146
  %473 = vmatpush1.msra.mxu0 %v145
  %474 = vmatprep.subr.mxu0 %v148
  %475 = vmatpush1.msra.mxu0 %v147
  %476 = vmatprep.subr.mxu0 %v150
  %477 = vmatpush1.msra.mxu0 %v149
  %478 = vmatprep.subr.mxu0 %v152
  %479 = vmatpush1.msra.mxu0 %v151
  %480 = vmatprep.subr.mxu0 %v154
  %481 = vmatpush1.msra.mxu0 %v153
  %482 = vmatprep.subr.mxu0 %v156
  %483 = vmatpush1.msra.mxu0 %v155
  %484 = vmatprep.subr.mxu0 %v158
  %485 = vmatpush1.msra.mxu0 %v157
  %486 = vmatprep.subr.mxu0 %v160
  %487 = vmatpush1.msra.mxu0 %v159
  %488 = vmatprep.subr.mxu0 0.0
  %489 = vmatpush1.msra.mxu0 0.0
  %490 = vmatprep.subr.mxu0 0.0
  %491 = vmatpush1.msra.mxu0 0.0
  %492 = vmatprep.subr.mxu0 0.0
  %493 = vmatpush1.msra.mxu0 0.0
  %494 = vmatprep.subr.mxu0 0.0
  %495 = vmatpush1.msra.mxu0 0.0
  %496 = vmatprep.subr.mxu0 0.0
  %497 = vmatpush1.msra.mxu0 0.0
  %498 = vmatprep.subr.mxu0 0.0
  %499 = vmatpush1.msra.mxu0 0.0
  %500 = vmatprep.subr.mxu0 0.0
  %501 = vmatpush1.msra.mxu0 0.0
  %502 = vmatprep.subr.mxu0 0.0
  %503 = vmatpush1.msra.mxu0 0.0
  %504 = vmatprep.subr.mxu0 0.0
  %505 = vmatpush1.msra.mxu0 0.0
  %506 = vmatprep.subr.mxu0 0.0
  %507 = vmatpush1.msra.mxu0 0.0
  %508 = vmatprep.subr.mxu0 0.0
  %509 = vmatpush1.msra.mxu0 0.0
  %510 = vmatprep.subr.mxu0 0.0
  %511 = vmatpush1.msra.mxu0 0.0
  %512 = vmatprep.subr.mxu0 0.0
  %513 = vmatpush1.msra.mxu0 0.0
  %514 = vmatprep.subr.mxu0 0.0
  %515 = vmatpush1.msra.mxu0 0.0
  %516 = vmatprep.subr.mxu0 0.0
  %517 = vmatpush1.msra.mxu0 0.0
  %518 = vmatprep.subr.mxu0 0.0
  %519 = vmatpush1.msra.mxu0 0.0
  %520 = vmatprep.subr.mxu0 0.0
  %521 = vmatpush1.msra.mxu0 0.0
  %522 = vmatprep.subr.mxu0 0.0
  %523 = vmatpush1.msra.mxu0 0.0
  %524 = vmatprep.subr.mxu0 0.0
  %525 = vmatpush1.msra.mxu0 0.0
  %526 = vmatprep.subr.mxu0 0.0
  %527 = vmatpush1.msra.mxu0 0.0
  %528 = vmatprep.subr.mxu0 0.0
  %529 = vmatpush1.msra.mxu0 0.0
  %530 = vmatprep.subr.mxu0 0.0
  %531 = vmatpush1.msra.mxu0 0.0
  %532 = vmatprep.subr.mxu0 0.0
  %533 = vmatpush1.msra.mxu0 0.0
  %534 = vmatprep.subr.mxu0 0.0
  %535 = vmatpush1.msra.mxu0 0.0
  %536 = vmatprep.mubr.f32.mxu0 0.0
  %537 = vmatmul.mubr.f32.gmra.mrb[0].mxu0 %v470
  %v538 = vpop.f32.mrb[0].mxu0
  %v539 = vadd.f32 0.0, %v538
  %v540 = vpop.f32.mrb[0].mxu0
  %v541 = vadd.f32 0.0, %v540
  %542 = vdwg.mxu0
  %v543 = vadd.f32 %v468, %v539
  %v544 = vadd.f32 %v469, %v541
  %v545 = vtanh.pop %v543
  %v546 = vtanh.pop %v544
  %v547 = vmul.f32 %v545, 0.5
  %v548 = vmul.f32 %v546, 0.5
  %v549 = vadd.f32 %v547, 0.5
  %v550 = vadd.f32 %v548, 0.5
  %v551 = vmul.f32 %v549, %v456
  %v552 = vmul.f32 %v549, %v546
  %554 = vrot.lane.b32.xlu0 %v552, 64
  %v555 = vpop.permute.xlu0 %554
  %v557 = vadd.f32 %v551, %v555
  %v558 = vtanh.pop %v557
  %v559 = vmul.f32 %v550, %v558
  %561 = vrot.lane.b32.xlu0 %v559, 64
  %v562 = vpop.permute.xlu0 %561
  %s564 = scalar_lea.vmem [#allocation3], 24
  %565 = vst.msk [vmem:[%s564] sm:$0xff] %vm166, %v562
  %s566 = smul.u32 4, 2
  %s567 = smul.addr %s566, 8
  %s568 = scalar_lea.vmem [#allocation2], %s567
  %v569 = vld [vmem:[%s568] sm:$0xff]
  %v570 = vld [vmem:[%s568 + $0x8] sm:$0xff]
  %v571 = vsel %vm166, %v562, 0
  %573 = vmatprep.subr.mxu0 %v146
  %574 = vmatpush1.msra.mxu0 %v145
  %575 = vmatprep.subr.mxu0 %v148
  %576 = vmatpush1.msra.mxu0 %v147
  %577 = vmatprep.subr.mxu0 %v150
  %578 = vmatpush1.msra.mxu0 %v149
  %579 = vmatprep.subr.mxu0 %v152
  %580 = vmatpush1.msra.mxu0 %v151
  %581 = vmatprep.subr.mxu0 %v154
  %582 = vmatpush1.msra.mxu0 %v153
  %583 = vmatprep.subr.mxu0 %v156
  %584 = vmatpush1.msra.mxu0 %v155
  %585 = vmatprep.subr.mxu0 %v158
  %586 = vmatpush1.msra.mxu0 %v157
  %587 = vmatprep.subr.mxu0 %v160
  %588 = vmatpush1.msra.mxu0 %v159
  %589 = vmatprep.subr.mxu0 0.0
  %590 = vmatpush1.msra.mxu0 0.0
  %591 = vmatprep.subr.mxu0 0.0
  %592 = vmatpush1.msra.mxu0 0.0
  %593 = vmatprep.subr.mxu0 0.0
  %594 = vmatpush1.msra.mxu0 0.0
  %595 = vmatprep.subr.mxu0 0.0
  %596 = vmatpush1.msra.mxu0 0.0
  %597 = vmatprep.subr.mxu0 0.0
  %598 = vmatpush1.msra.mxu0 0.0
  %599 = vmatprep.subr.mxu0 0.0
  %600 = vmatpush1.msra.mxu0 0.0
  %601 = vmatprep.subr.mxu0 0.0
  %602 = vmatpush1.msra.mxu0 0.0
  %603 = vmatprep.subr.mxu0 0.0
  %604 = vmatpush1.msra.mxu0 0.0
  %605 = vmatprep.subr.mxu0 0.0
  %606 = vmatpush1.msra.mxu0 0.0
  %607 = vmatprep.subr.mxu0 0.0
  %608 = vmatpush1.msra.mxu0 0.0
  %609 = vmatprep.subr.mxu0 0.0
  %610 = vmatpush1.msra.mxu0 0.0
  %611 = vmatprep.subr.mxu0 0.0
  %612 = vmatpush1.msra.mxu0 0.0
  %613 = vmatprep.subr.mxu0 0.0
  %614 = vmatpush1.msra.mxu0 0.0
  %615 = vmatprep.subr.mxu0 0.0
  %616 = vmatpush1.msra.mxu0 0.0
  %617 = vmatprep.subr.mxu0 0.0
  %618 = vmatpush1.msra.mxu0 0.0
  %619 = vmatprep.subr.mxu0 0.0
  %620 = vmatpush1.msra.mxu0 0.0
  %621 = vmatprep.subr.mxu0 0.0
  %622 = vmatpush1.msra.mxu0 0.0
  %623 = vmatprep.subr.mxu0 0.0
  %624 = vmatpush1.msra.mxu0 0.0
  %625 = vmatprep.subr.mxu0 0.0
  %626 = vmatpush1.msra.mxu0 0.0
  %627 = vmatprep.subr.mxu0 0.0
  %628 = vmatpush1.msra.mxu0 0.0
  %629 = vmatprep.subr.mxu0 0.0
  %630 = vmatpush1.msra.mxu0 0.0
  %631 = vmatprep.subr.mxu0 0.0
  %632 = vmatpush1.msra.mxu0 0.0
  %633 = vmatprep.subr.mxu0 0.0
  %634 = vmatpush1.msra.mxu0 0.0
  %635 = vmatprep.subr.mxu0 0.0
  %636 = vmatpush1.msra.mxu0 0.0
  %637 = vmatprep.mubr.f32.mxu0 0.0
  %638 = vmatmul.mubr.f32.gmra.mrb[0].mxu0 %v571
  %v639 = vpop.f32.mrb[0].mxu0
  %v640 = vadd.f32 0.0, %v639
  %v641 = vpop.f32.mrb[0].mxu0
  %v642 = vadd.f32 0.0, %v641
  %643 = vdwg.mxu0
  %v644 = vadd.f32 %v569, %v640
  %v645 = vadd.f32 %v570, %v642
  %v646 = vtanh.pop %v644
  %v647 = vtanh.pop %v645
  %v648 = vmul.f32 %v646, 0.5
  %v649 = vmul.f32 %v647, 0.5
  %v650 = vadd.f32 %v648, 0.5
  %v651 = vadd.f32 %v649, 0.5
  %v652 = vmul.f32 %v650, %v557
  %v653 = vmul.f32 %v650, %v647
  %655 = vrot.lane.b32.xlu0 %v653, 64
  %v656 = vpop.permute.xlu0 %655
  %v658 = vadd.f32 %v652, %v656
  %v659 = vtanh.pop %v658
  %v660 = vmul.f32 %v651, %v659
  %662 = vrot.lane.b32.xlu0 %v660, 64
  %v663 = vpop.permute.xlu0 %662
  %s665 = scalar_lea.vmem [#allocation3], 32
  %666 = vst.msk [vmem:[%s665] sm:$0xff] %vm166, %v663
  %s667 = smul.u32 5, 2
  %s668 = smul.addr %s667, 8
  %s669 = scalar_lea.vmem [#allocation2], %s668
  %v670 = vld [vmem:[%s669] sm:$0xff]
  %v671 = vld [vmem:[%s669 + $0x8] sm:$0xff]
  %v672 = vsel %vm166, %v663, 0
  %674 = vmatprep.subr.mxu0 %v146
  %675 = vmatpush1.msra.mxu0 %v145
  %676 = vmatprep.subr.mxu0 %v148
  %677 = vmatpush1.msra.mxu0 %v147
  %678 = vmatprep.subr.mxu0 %v150
  %679 = vmatpush1.msra.mxu0 %v149
  %680 = vmatprep.subr.mxu0 %v152
  %681 = vmatpush1.msra.mxu0 %v151
  %682 = vmatprep.subr.mxu0 %v154
  %683 = vmatpush1.msra.mxu0 %v153
  %684 = vmatprep.subr.mxu0 %v156
  %685 = vmatpush1.msra.mxu0 %v155
  %686 = vmatprep.subr.mxu0 %v158
  %687 = vmatpush1.msra.mxu0 %v157
  %688 = vmatprep.subr.mxu0 %v160
  %689 = vmatpush1.msra.mxu0 %v159
  %690 = vmatprep.subr.mxu0 0.0
  %691 = vmatpush1.msra.mxu0 0.0
  %692 = vmatprep.subr.mxu0 0.0
  %693 = vmatpush1.msra.mxu0 0.0
  %694 = vmatprep.subr.mxu0 0.0
  %695 = vmatpush1.msra.mxu0 0.0
  %696 = vmatprep.subr.mxu0 0.0
  %697 = vmatpush1.msra.mxu0 0.0
  %698 = vmatprep.subr.mxu0 0.0
  %699 = vmatpush1.msra.mxu0 0.0
  %700 = vmatprep.subr.mxu0 0.0
  %701 = vmatpush1.msra.mxu0 0.0
  %702 = vmatprep.subr.mxu0 0.0
  %703 = vmatpush1.msra.mxu0 0.0
  %704 = vmatprep.subr.mxu0 0.0
  %705 = vmatpush1.msra.mxu0 0.0
  %706 = vmatprep.subr.mxu0 0.0
  %707 = vmatpush1.msra.mxu0 0.0
  %708 = vmatprep.subr.mxu0 0.0
  %709 = vmatpush1.msra.mxu0 0.0
  %710 = vmatprep.subr.mxu0 0.0
  %711 = vmatpush1.msra.mxu0 0.0
  %712 = vmatprep.subr.mxu0 0.0
  %713 = vmatpush1.msra.mxu0 0.0
  %714 = vmatprep.subr.mxu0 0.0
  %715 = vmatpush1.msra.mxu0 0.0
  %716 = vmatprep.subr.mxu0 0.0
  %717 = vmatpush1.msra.mxu0 0.0
  %718 = vmatprep.subr.mxu0 0.0
  %719 = vmatpush1.msra.mxu0 0.0
  %720 = vmatprep.subr.mxu0 0.0
  %721 = vmatpush1.msra.mxu0 0.0
  %722 = vmatprep.subr.mxu0 0.0
  %723 = vmatpush1.msra.mxu0 0.0
  %724 = vmatprep.subr.mxu0 0.0
  %725 = vmatpush1.msra.mxu0 0.0
  %726 = vmatprep.subr.mxu0 0.0
  %727 = vmatpush1.msra.mxu0 0.0
  %728 = vmatprep.subr.mxu0 0.0
  %729 = vmatpush1.msra.mxu0 0.0
  %730 = vmatprep.subr.mxu0 0.0
  %731 = vmatpush1.msra.mxu0 0.0
  %732 = vmatprep.subr.mxu0 0.0
  %733 = vmatpush1.msra.mxu0 0.0
  %734 = vmatprep.subr.mxu0 0.0
  %735 = vmatpush1.msra.mxu0 0.0
  %736 = vmatprep.subr.mxu0 0.0
  %737 = vmatpush1.msra.mxu0 0.0
  %738 = vmatprep.mubr.f32.mxu0 0.0
  %739 = vmatmul.mubr.f32.gmra.mrb[0].mxu0 %v672
  %v740 = vpop.f32.mrb[0].mxu0
  %v741 = vadd.f32 0.0, %v740
  %v742 = vpop.f32.mrb[0].mxu0
  %v743 = vadd.f32 0.0, %v742
  %744 = vdwg.mxu0
  %v745 = vadd.f32 %v670, %v741
  %v746 = vadd.f32 %v671, %v743
  %v747 = vtanh.pop %v745
  %v748 = vtanh.pop %v746
  %v749 = vmul.f32 %v747, 0.5
  %v750 = vmul.f32 %v748, 0.5
  %v751 = vadd.f32 %v749, 0.5
  %v752 = vadd.f32 %v750, 0.5
  %v753 = vmul.f32 %v751, %v658
  %v754 = vmul.f32 %v751, %v748
  %756 = vrot.lane.b32.xlu0 %v754, 64
  %v757 = vpop.permute.xlu0 %756
  %v759 = vadd.f32 %v753, %v757
  %v760 = vtanh.pop %v759
  %v761 = vmul.f32 %v752, %v760
  %763 = vrot.lane.b32.xlu0 %v761, 64
  %v764 = vpop.permute.xlu0 %763
  %s766 = scalar_lea.vmem [#allocation3], 40
  %767 = vst.msk [vmem:[%s766] sm:$0xff] %vm166, %v764
  %s768 = smul.u32 6, 2
  %s769 = smul.addr %s768, 8
  %s770 = scalar_lea.vmem [#allocation2], %s769
  %v771 = vld [vmem:[%s770] sm:$0xff]
  %v772 = vld [vmem:[%s770 + $0x8] sm:$0xff]
  %v773 = vsel %vm166, %v764, 0
  %775 = vmatprep.subr.mxu0 %v146
  %776 = vmatpush1.msra.mxu0 %v145
  %777 = vmatprep.subr.mxu0 %v148
  %778 = vmatpush1.msra.mxu0 %v147
  %779 = vmatprep.subr.mxu0 %v150
  %780 = vmatpush1.msra.mxu0 %v149
  %781 = vmatprep.subr.mxu0 %v152
  %782 = vmatpush1.msra.mxu0 %v151
  %783 = vmatprep.subr.mxu0 %v154
  %784 = vmatpush1.msra.mxu0 %v153
  %785 = vmatprep.subr.mxu0 %v156
  %786 = vmatpush1.msra.mxu0 %v155
  %787 = vmatprep.subr.mxu0 %v158
  %788 = vmatpush1.msra.mxu0 %v157
  %789 = vmatprep.subr.mxu0 %v160
  %790 = vmatpush1.msra.mxu0 %v159
  %791 = vmatprep.subr.mxu0 0.0
  %792 = vmatpush1.msra.mxu0 0.0
  %793 = vmatprep.subr.mxu0 0.0
  %794 = vmatpush1.msra.mxu0 0.0
  %795 = vmatprep.subr.mxu0 0.0
  %796 = vmatpush1.msra.mxu0 0.0
  %797 = vmatprep.subr.mxu0 0.0
  %798 = vmatpush1.msra.mxu0 0.0
  %799 = vmatprep.subr.mxu0 0.0
  %800 = vmatpush1.msra.mxu0 0.0
  %801 = vmatprep.subr.mxu0 0.0
  %802 = vmatpush1.msra.mxu0 0.0
  %803 = vmatprep.subr.mxu0 0.0
  %804 = vmatpush1.msra.mxu0 0.0
  %805 = vmatprep.subr.mxu0 0.0
  %806 = vmatpush1.msra.mxu0 0.0
  %807 = vmatprep.subr.mxu0 0.0
  %808 = vmatpush1.msra.mxu0 0.0
  %809 = vmatprep.subr.mxu0 0.0
  %810 = vmatpush1.msra.mxu0 0.0
  %811 = vmatprep.subr.mxu0 0.0
  %812 = vmatpush1.msra.mxu0 0.0
  %813 = vmatprep.subr.mxu0 0.0
  %814 = vmatpush1.msra.mxu0 0.0
  %815 = vmatprep.subr.mxu0 0.0
  %816 = vmatpush1.msra.mxu0 0.0
  %817 = vmatprep.subr.mxu0 0.0
  %818 = vmatpush1.msra.mxu0 0.0
  %819 = vmatprep.subr.mxu0 0.0
  %820 = vmatpush1.msra.mxu0 0.0
  %821 = vmatprep.subr.mxu0 0.0
  %822 = vmatpush1.msra.mxu0 0.0
  %823 = vmatprep.subr.mxu0 0.0
  %824 = vmatpush1.msra.mxu0 0.0
  %825 = vmatprep.subr.mxu0 0.0
  %826 = vmatpush1.msra.mxu0 0.0
  %827 = vmatprep.subr.mxu0 0.0
  %828 = vmatpush1.msra.mxu0 0.0
  %829 = vmatprep.subr.mxu0 0.0
  %830 = vmatpush1.msra.mxu0 0.0
  %831 = vmatprep.subr.mxu0 0.0
  %832 = vmatpush1.msra.mxu0 0.0
  %833 = vmatprep.subr.mxu0 0.0
  %834 = vmatpush1.msra.mxu0 0.0
  %835 = vmatprep.subr.mxu0 0.0
  %836 = vmatpush1.msra.mxu0 0.0
  %837 = vmatprep.subr.mxu0 0.0
  %838 = vmatpush1.msra.mxu0 0.0
  %839 = vmatprep.mubr.f32.mxu0 0.0
  %840 = vmatmul.mubr.f32.gmra.mrb[0].mxu0 %v773
  %v841 = vpop.f32.mrb[0].mxu0
  %v842 = vadd.f32 0.0, %v841
  %v843 = vpop.f32.mrb[0].mxu0
  %v844 = vadd.f32 0.0, %v843
  %845 = vdwg.mxu0
  %v846 = vadd.f32 %v771, %v842
  %v847 = vadd.f32 %v772, %v844
  %v848 = vtanh.pop %v846
  %v849 = vtanh.pop %v847
  %v850 = vmul.f32 %v848, 0.5
  %v851 = vmul.f32 %v849, 0.5
  %v852 = vadd.f32 %v850, 0.5
  %v853 = vadd.f32 %v851, 0.5
  %v854 = vmul.f32 %v852, %v759
  %v855 = vmul.f32 %v852, %v849
  %857 = vrot.lane.b32.xlu0 %v855, 64
  %v858 = vpop.permute.xlu0 %857
  %v860 = vadd.f32 %v854, %v858
  %v861 = vtanh.pop %v860
  %v862 = vmul.f32 %v853, %v861
  %864 = vrot.lane.b32.xlu0 %v862, 64
  %v865 = vpop.permute.xlu0 %864
  %s867 = scalar_lea.vmem [#allocation3], 48
  %868 = vst.msk [vmem:[%s867] sm:$0xff] %vm166, %v865
  %s869 = smul.u32 7, 2
  %s870 = smul.addr %s869, 8
  %s871 = scalar_lea.vmem [#allocation2], %s870
  %v872 = vld [vmem:[%s871] sm:$0xff]
  %v873 = vld [vmem:[%s871 + $0x8] sm:$0xff]
  %v874 = vsel %vm166, %v865, 0
  %876 = vmatprep.subr.mxu0 %v146
  %877 = vmatpush1.msra.mxu0 %v145
  %878 = vmatprep.subr.mxu0 %v148
  %879 = vmatpush1.msra.mxu0 %v147
  %880 = vmatprep.subr.mxu0 %v150
  %881 = vmatpush1.msra.mxu0 %v149
  %882 = vmatprep.subr.mxu0 %v152
  %883 = vmatpush1.msra.mxu0 %v151
  %884 = vmatprep.subr.mxu0 %v154
  %885 = vmatpush1.msra.mxu0 %v153
  %886 = vmatprep.subr.mxu0 %v156
  %887 = vmatpush1.msra.mxu0 %v155
  %888 = vmatprep.subr.mxu0 %v158
  %889 = vmatpush1.msra.mxu0 %v157
  %890 = vmatprep.subr.mxu0 %v160
  %891 = vmatpush1.msra.mxu0 %v159
  %892 = vmatprep.subr.mxu0 0.0
  %893 = vmatpush1.msra.mxu0 0.0
  %894 = vmatprep.subr.mxu0 0.0
  %895 = vmatpush1.msra.mxu0 0.0
  %896 = vmatprep.subr.mxu0 0.0
  %897 = vmatpush1.msra.mxu0 0.0
  %898 = vmatprep.subr.mxu0 0.0
  %899 = vmatpush1.msra.mxu0 0.0
  %900 = vmatprep.subr.mxu0 0.0
  %901 = vmatpush1.msra.mxu0 0.0
  %902 = vmatprep.subr.mxu0 0.0
  %903 = vmatpush1.msra.mxu0 0.0
  %904 = vmatprep.subr.mxu0 0.0
  %905 = vmatpush1.msra.mxu0 0.0
  %906 = vmatprep.subr.mxu0 0.0
  %907 = vmatpush1.msra.mxu0 0.0
  %908 = vmatprep.subr.mxu0 0.0
  %909 = vmatpush1.msra.mxu0 0.0
  %910 = vmatprep.subr.mxu0 0.0
  %911 = vmatpush1.msra.mxu0 0.0
  %912 = vmatprep.subr.mxu0 0.0
  %913 = vmatpush1.msra.mxu0 0.0
  %914 = vmatprep.subr.mxu0 0.0
  %915 = vmatpush1.msra.mxu0 0.0
  %916 = vmatprep.subr.mxu0 0.0
  %917 = vmatpush1.msra.mxu0 0.0
  %918 = vmatprep.subr.mxu0 0.0
  %919 = vmatpush1.msra.mxu0 0.0
  %920 = vmatprep.subr.mxu0 0.0
  %921 = vmatpush1.msra.mxu0 0.0
  %922 = vmatprep.subr.mxu0 0.0
  %923 = vmatpush1.msra.mxu0 0.0
  %924 = vmatprep.subr.mxu0 0.0
  %925 = vmatpush1.msra.mxu0 0.0
  %926 = vmatprep.subr.mxu0 0.0
  %927 = vmatpush1.msra.mxu0 0.0
  %928 = vmatprep.subr.mxu0 0.0
  %929 = vmatpush1.msra.mxu0 0.0
  %930 = vmatprep.subr.mxu0 0.0
  %931 = vmatpush1.msra.mxu0 0.0
  %932 = vmatprep.subr.mxu0 0.0
  %933 = vmatpush1.msra.mxu0 0.0
  %934 = vmatprep.subr.mxu0 0.0
  %935 = vmatpush1.msra.mxu0 0.0
  %936 = vmatprep.subr.mxu0 0.0
  %937 = vmatpush1.msra.mxu0 0.0
  %938 = vmatprep.subr.mxu0 0.0
  %939 = vmatpush1.msra.mxu0 0.0
  %940 = vmatprep.mubr.f32.mxu0 0.0
  %941 = vmatmul.mubr.f32.gmra.mrb[0].mxu0 %v874
  %v942 = vpop.f32.mrb[0].mxu0
  %v943 = vadd.f32 0.0, %v942
  %v944 = vpop.f32.mrb[0].mxu0
  %v945 = vadd.f32 0.0, %v944
  %946 = vdwg.mxu0
  %v947 = vadd.f32 %v872, %v943
  %v948 = vadd.f32 %v873, %v945
  %v949 = vtanh.pop %v947
  %v950 = vtanh.pop %v948
  %v951 = vmul.f32 %v949, 0.5
  %v952 = vmul.f32 %v950, 0.5
  %v953 = vadd.f32 %v951, 0.5
  %v954 = vadd.f32 %v952, 0.5
  %v955 = vmul.f32 %v953, %v860
  %v956 = vmul.f32 %v953, %v950
  %958 = vrot.lane.b32.xlu0 %v956, 64
  %v959 = vpop.permute.xlu0 %958
  %v961 = vadd.f32 %v955, %v959
  %v962 = vtanh.pop %v961
  %v963 = vmul.f32 %v954, %v962
  %965 = vrot.lane.b32.xlu0 %v963, 64
  %v966 = vpop.permute.xlu0 %965
  %s968 = scalar_lea.vmem [#allocation3], 56
  %969 = vst.msk [vmem:[%s968] sm:$0xff] %vm166, %v966
  %v970 = vld [vmem:[#allocation3] sm:$0xff]
  %v971 = vld [vmem:[#allocation3 + $0x8] sm:$0xff]
  %v972 = vld [vmem:[#allocation3 + $0x10] sm:$0xff]
  %v973 = vld [vmem:[#allocation3 + $0x18] sm:$0xff]
  %v974 = vld [vmem:[#allocation3 + $0x20] sm:$0xff]
  %v975 = vld [vmem:[#allocation3 + $0x28] sm:$0xff]
  %v976 = vld [vmem:[#allocation3 + $0x30] sm:$0xff]
  %v977 = vld [vmem:[#allocation3 + $0x38] sm:$0xff]
  %v978 = vld [vmem:[%s4] sm:$0xff]
  %v979 = vld [vmem:[%s4 + $0x8] sm:$0xff]
  %v980 = vld [vmem:[%s4 + $0x10] sm:$0xff]
  %v981 = vld [vmem:[%s4 + $0x18] sm:$0xff]
  %v982 = vld [vmem:[%s4 + $0x20] sm:$0xff]
  %v983 = vld [vmem:[%s4 + $0x28] sm:$0xff]
  %v984 = vld [vmem:[%s4 + $0x30] sm:$0xff]
  %v985 = vld [vmem:[%s4 + $0x38] sm:$0xff]
  %v986 = vld [vmem:[#allocation4] sm:$0x1]
  %v988 = vlaneseq
  %v989 = vshrl.u32 %v988, 7
  %v990 = vsub.s32 0, %v989
  %v991 = vrot.slane %v986, %v990
  %v994 = vsel %vm166, %v970, 0
  %v997 = vsel %vm166, %v971, 0
  %v1000 = vsel %vm166, %v972, 0
  %v1003 = vsel %vm166, %v973, 0
  %v1006 = vsel %vm166, %v974, 0
  %v1009 = vsel %vm166, %v975, 0
  %v1012 = vsel %vm166, %v976, 0
  %v1015 = vsel %vm166, %v977, 0
  %1017 = vmatprep.subr.mxu0 0.0
  %1018 = vmatpush1.msra.mxu0 %v978
  %1019 = vmatprep.subr.mxu0 0.0
  %1020 = vmatpush1.msra.mxu0 %v979
  %1021 = vmatprep.subr.mxu0 0.0
  %1022 = vmatpush1.msra.mxu0 %v980
  %1023 = vmatprep.subr.mxu0 0.0
  %1024 = vmatpush1.msra.mxu0 %v981
  %1025 = vmatprep.subr.mxu0 0.0
  %1026 = vmatpush1.msra.mxu0 %v982
  %1027 = vmatprep.subr.mxu0 0.0
  %1028 = vmatpush1.msra.mxu0 %v983
  %1029 = vmatprep.subr.mxu0 0.0
  %1030 = vmatpush1.msra.mxu0 %v984
  %1031 = vmatprep.subr.mxu0 0.0
  %1032 = vmatpush1.msra.mxu0 %v985
  %1033 = vmatprep.subr.mxu0 0.0
  %1034 = vmatpush1.msra.mxu0 0.0
  %1035 = vmatprep.subr.mxu0 0.0
  %1036 = vmatpush1.msra.mxu0 0.0
  %1037 = vmatprep.subr.mxu0 0.0
  %1038 = vmatpush1.msra.mxu0 0.0
  %1039 = vmatprep.subr.mxu0 0.0
  %1040 = vmatpush1.msra.mxu0 0.0
  %1041 = vmatprep.subr.mxu0 0.0
  %1042 = vmatpush1.msra.mxu0 0.0
  %1043 = vmatprep.subr.mxu0 0.0
  %1044 = vmatpush1.msra.mxu0 0.0
  %1045 = vmatprep.subr.mxu0 0.0
  %1046 = vmatpush1.msra.mxu0 0.0
  %1047 = vmatprep.subr.mxu0 0.0
  %1048 = vmatpush1.msra.mxu0 0.0
  %1049 = vmatprep.subr.mxu0 0.0
  %1050 = vmatpush1.msra.mxu0 0.0
  %1051 = vmatprep.subr.mxu0 0.0
  %1052 = vmatpush1.msra.mxu0 0.0
  %1053 = vmatprep.subr.mxu0 0.0
  %1054 = vmatpush1.msra.mxu0 0.0
  %1055 = vmatprep.subr.mxu0 0.0
  %1056 = vmatpush1.msra.mxu0 0.0
  %1057 = vmatprep.subr.mxu0 0.0
  %1058 = vmatpush1.msra.mxu0 0.0
  %1059 = vmatprep.subr.mxu0 0.0
  %1060 = vmatpush1.msra.mxu0 0.0
  %1061 = vmatprep.subr.mxu0 0.0
  %1062 = vmatpush1.msra.mxu0 0.0
  %1063 = vmatprep.subr.mxu0 0.0
  %1064 = vmatpush1.msra.mxu0 0.0
  %1065 = vmatprep.subr.mxu0 0.0
  %1066 = vmatpush1.msra.mxu0 0.0
  %1067 = vmatprep.subr.mxu0 0.0
  %1068 = vmatpush1.msra.mxu0 0.0
  %1069 = vmatprep.subr.mxu0 0.0
  %1070 = vmatpush1.msra.mxu0 0.0
  %1071 = vmatprep.subr.mxu0 0.0
  %1072 = vmatpush1.msra.mxu0 0.0
  %1073 = vmatprep.subr.mxu0 0.0
  %1074 = vmatpush1.msra.mxu0 0.0
  %1075 = vmatprep.subr.mxu0 0.0
  %1076 = vmatpush1.msra.mxu0 0.0
  %1077 = vmatprep.subr.mxu0 0.0
  %1078 = vmatpush1.msra.mxu0 0.0
  %1079 = vmatprep.subr.mxu0 0.0
  %1080 = vmatpush1.msra.mxu0 0.0
  %1081 = vmatprep.mubr.f32.mxu0 0.0
  %1082 = vmatmul.mubr.f32.gmra.mrb[0].mxu0 %v994
  %v1083 = vpop.f32.mrb[0].mxu0
  %v1084 = vadd.f32 %v991, %v1083
  %v1085 = vpop.f32.mrb[0].mxu0
  %1086 = vmatprep.mubr.f32.mxu0 0.0
  %1087 = vmatmul.mubr.f32.gmra.mrb[0].mxu0 %v997
  %v1088 = vpop.f32.mrb[0].mxu0
  %v1089 = vadd.f32 %v991, %v1088
  %v1090 = vpop.f32.mrb[0].mxu0
  %1091 = vmatprep.mubr.f32.mxu0 0.0
  %1092 = vmatmul.mubr.f32.gmra.mrb[0].mxu0 %v1000
  %v1093 = vpop.f32.mrb[0].mxu0
  %v1094 = vadd.f32 %v991, %v1093
  %v1095 = vpop.f32.mrb[0].mxu0
  %1096 = vmatprep.mubr.f32.mxu0 0.0
  %1097 = vmatmul.mubr.f32.gmra.mrb[0].mxu0 %v1003
  %v1098 = vpop.f32.mrb[0].mxu0
  %v1099 = vadd.f32 %v991, %v1098
  %v1100 = vpop.f32.mrb[0].mxu0
  %1101 = vmatprep.mubr.f32.mxu0 0.0
  %1102 = vmatmul.mubr.f32.gmra.mrb[0].mxu0 %v1006
  %v1103 = vpop.f32.mrb[0].mxu0
  %v1104 = vadd.f32 %v991, %v1103
  %v1105 = vpop.f32.mrb[0].mxu0
  %1106 = vmatprep.mubr.f32.mxu0 0.0
  %1107 = vmatmul.mubr.f32.gmra.mrb[0].mxu0 %v1009
  %v1108 = vpop.f32.mrb[0].mxu0
  %v1109 = vadd.f32 %v991, %v1108
  %v1110 = vpop.f32.mrb[0].mxu0
  %1111 = vmatprep.mubr.f32.mxu0 0.0
  %1112 = vmatmul.mubr.f32.gmra.mrb[0].mxu0 %v1012
  %v1113 = vpop.f32.mrb[0].mxu0
  %v1114 = vadd.f32 %v991, %v1113
  %v1115 = vpop.f32.mrb[0].mxu0
  %1116 = vmatprep.mubr.f32.mxu0 0.0
  %1117 = vmatmul.mubr.f32.gmra.mrb[0].mxu0 %v1015
  %v1118 = vpop.f32.mrb[0].mxu0
  %v1119 = vadd.f32 %v991, %v1118
  %v1120 = vpop.f32.mrb[0].mxu0
  %1121 = vdwg.mxu0
  %vm1122 = vcmask 7168
  %1123 = vst.msk [vmem:[%s6] sm:$0xff] %vm1122, %v1084
  %1124 = vst.msk [vmem:[%s6 + $0x8] sm:$0xff] %vm1122, %v1089
  %1125 = vst.msk [vmem:[%s6 + $0x10] sm:$0xff] %vm1122, %v1094
  %1126 = vst.msk [vmem:[%s6 + $0x18] sm:$0xff] %vm1122, %v1099
  %1127 = vst.msk [vmem:[%s6 + $0x20] sm:$0xff] %vm1122, %v1104
  %1128 = vst.msk [vmem:[%s6 + $0x28] sm:$0xff] %vm1122, %v1109
  %1129 = vst.msk [vmem:[%s6 + $0x30] sm:$0xff] %vm1122, %v1114
  %1130 = vst.msk [vmem:[%s6 + $0x38] sm:$0xff] %vm1122, %v1119
  // Predicated region
  $region26: #{lstm_forward.1} parent=0 // pred_check
    _
  $region27: #{lstm_forward.1} parent=0 // pred_check_branch
    %1132 = sbr.rel (0) target = $region29
  $region28: #{lstm_forward.1} parent=0 // pred_region
    _
  $region29: #{lstm_forward.1} parent=0 // pred_fallthru
    _
  // Predicated region
  $region30: #{lstm_forward.1} parent=0 // pred_check
    _
  $region31: #{lstm_forward.1} parent=0 // pred_check_branch
    %1134 = sbr.rel (0) target = $region33
  $region32: #{lstm_forward.1} parent=0 // pred_region
    _
  $region33: #{lstm_forward.1} parent=0 // pred_fallthru
    _

</llo_original>
